<compile_context>
chip_gen: v7x
topology: tpu7x:2x2x1
jax: 0.10.0
libtpu: 0.0.40
codegen_flags: <defaults>
</compile_context>

<pallas_src>
import functools

import jax
import jax.numpy as jnp
from jax.experimental import pallas as pl
from jax.experimental.pallas import tpu as pltpu


_VMEM_BUDGET = 48 << 20       # fits v7x's 64 MiB physical VMEM with headroom


def _round_up(x: int, m: int) -> int:
    return (x + m - 1) // m * m


def _param_bytes(params) -> int:
    return sum(int(a.size) * jnp.dtype(a.dtype).itemsize for a in params)


def _pick_block(n_rows: int, block_n: int, bytes_per_row: int, resident: int) -> int:
    """128-aligned row tile: capped at block_n, >=2 grid steps whenever the row count
    allows (so v7x's second TensorCore gets work), shrunk until streams + weights fit
    the VMEM budget."""
    block = min(block_n, max(128, _round_up(pl.cdiv(n_rows, 2), 128)))
    while block > 128 and resident + block * bytes_per_row > _VMEM_BUDGET:
        block = max(128, (block // 2) // 128 * 128)
    return block


def _vmem_limit(block: int, bytes_per_row: int, resident: int) -> int:
    est = resident + block * bytes_per_row + (4 << 20)
    return int(min(max(est, 32 << 20), _VMEM_BUDGET))


def _resident(a):
    """Grid-invariant operand (weight / bias): constant block index, so Pallas DMAs it
    once and reuses it across all grid steps.

    TODO(synk): feedback #4 suggests pipeline_mode=pl.Buffered(1) here to single-buffer
    these operands (halves their VMEM footprint at large H); kept at the default
    double-buffering to stay on the widely exercised lowering path."""
    zero = (0,) * len(a.shape)
    return pl.BlockSpec(a.shape, lambda i, z=zero: z)


# ---------------------------------------------------------------------------
# Encoder kernel: ResidualMLP (n_layers=3), inference mode.
# ---------------------------------------------------------------------------
def _residual_mlp_kernel(x_ref, w0_ref, b0_ref, w1_ref, b1_ref, wo_ref, bo_ref,
                         o_ref):
    # Cast the streamed tile to bf16 in-kernel (feedback #1: no wrapper astype pass).
    x = x_ref[...].astype(jnp.bfloat16)

    # layer 0: h = relu(x @ W0 + b0)        (bf16 MXU operands, f32 accumulate)
    h = jnp.dot(x, w0_ref[...], preferred_element_type=jnp.float32) + b0_ref[...]
    h = jnp.maximum(h, 0.0)

    # hidden layer (residual): h = relu(h @ W1 + b1) + h
    # TODO(synk): training-mode dropout (RNG mask) not implemented; eval == identity.
    res = h
    h = jnp.dot(h.astype(jnp.bfloat16), w1_ref[...],
                preferred_element_type=jnp.float32) + b1_ref[...]
    h = jnp.maximum(h, 0.0) + res

    # output layer (residual): h = relu(h @ Wo + bo) + h
    res = h
    h = jnp.dot(h.astype(jnp.bfloat16), wo_ref[...],
                preferred_element_type=jnp.float32) + bo_ref[...]
    h = jnp.maximum(h, 0.0) + res

    o_ref[...] = h.astype(o_ref.dtype)


@functools.partial(jax.jit, static_argnames=("block_n",))
def residual_mlp_pallas(x, enc_params, *, block_n=1024):
    """ResidualMLP encoder. x: [N, in_dim] (any float dtype) -> h: [N, Hp] bf16."""
    assert block_n % 128 == 0 and block_n >= 128
    n, in_dim = x.shape
    w0, b0, w1, b1, wo, bo = enc_params
    hidden = w0.shape[1]
    if n == 0:                                    # empty-batch guard
        return jnp.zeros((0, hidden), jnp.bfloat16)

    resident = 2 * _param_bytes((w0, b0, w1, b1, wo, bo))      # double-buffered weights
    bytes_per_row = (2 * in_dim * x.dtype.itemsize             # streamed x tile (2 bufs)
                     + 2 * hidden * 2                          # streamed out tile (2 bufs)
                     + 4 * hidden * 4)                         # live f32 temps
    block = _pick_block(n, block_n, bytes_per_row, resident)
    grid = pl.cdiv(n, block)                                   # partial tail block OK:
                                                               # rows are independent and
                                                               # output writes are masked
    return pl.pallas_call(
        _residual_mlp_kernel,
        out_shape=jax.ShapeDtypeStruct((n, hidden), jnp.bfloat16),
        grid_spec=pltpu.PrefetchScalarGridSpec(
            num_scalar_prefetch=0,
            grid=(grid,),
            in_specs=[
                pl.BlockSpec((block, in_dim), lambda i: (i, 0)),   # node-row tile
                _resident(w0), _resident(b0), _resident(w1), _resident(b1),
                _resident(wo), _resident(bo),
            ],
            out_specs=pl.BlockSpec((block, hidden), lambda i: (i, 0)),
        ),
        compiler_params=pltpu.CompilerParams(
            dimension_semantics=("parallel",),
            vmem_limit_bytes=_vmem_limit(block, bytes_per_row, resident)),
    )(x, w0, b0, w1, b1, wo, bo)


# ---------------------------------------------------------------------------
# Link-scorer kernel: Linear(2H,H)-ReLU-Linear(H,H)-ReLU-Linear(H,1)-sigmoid,
# with the first layer computed as h_src@W1a + h_dst@W1b (no [E,2H] concat).
# ---------------------------------------------------------------------------
def _link_score_kernel(s_ref, d_ref, w1a_ref, w1b_ref, b1_ref,
                       w2_ref, b2_ref, w3_ref, b3_ref, o_ref):
    s = s_ref[...].astype(jnp.bfloat16)
    d = d_ref[...].astype(jnp.bfloat16)

    # layer 1: relu(cat([s, d]) @ W1 + b1)  ==  relu(s @ W1a + d @ W1b + b1)
    h1 = (jnp.dot(s, w1a_ref[...], preferred_element_type=jnp.float32)
          + jnp.dot(d, w1b_ref[...], preferred_element_type=jnp.float32)
          + b1_ref[...])
    h1 = jnp.maximum(h1, 0.0)

    # layer 2: relu(h1 @ W2 + b2)
    h2 = jnp.dot(h1.astype(jnp.bfloat16), w2_ref[...],
                 preferred_element_type=jnp.float32) + b2_ref[...]
    h2 = jnp.maximum(h2, 0.0)

    # Final H->1 projection producing a lane-dense (1, block) row directly.
    # NOTE(perf feedback #3): the review suggested dot -> [block,1] + a column->row
    # relayout in case this dot_general transposes h2 through the XLU.  Kept as the
    # direct (1,H)x(block,H)->(1,block) contraction because (a) it is the proven-clean
    # lowering path, (b) a (block,1)->(1,block) relayout of a 1-lane-wide value is itself
    # an XLU/relayout op Mosaic may reject, and (c) the rhs here is bf16, so any fallback
    # transpose moves half the bytes of an f32 one.
    # TODO(synk): verify with pl.lower_as_mlir on hardware and switch if an h2 transpose
    # shows up in the MLIR.
    logits = jax.lax.dot_general(
        w3_ref[...], h2.astype(jnp.bfloat16),
        dimension_numbers=(((1,), (1,)), ((), ())),
        preferred_element_type=jnp.float32)                    # (1, block)
    logits = logits + b3_ref[0]                                # scalar bias from SMEM
    o_ref[...] = jax.nn.sigmoid(logits).astype(o_ref.dtype)


@functools.partial(jax.jit, static_argnames=("block_n",))
def link_score_pallas(h_src, h_dst, proj_params, *, block_n=1024):
    """Link scorer. h_src, h_dst: [E, H] -> sigmoid scores [E] (f32)."""
    assert block_n % 128 == 0 and block_n >= 128
    e, hidden = h_src.shape
    w1a, w1b, b1, w2, b2, w3, b3 = proj_params
    if e == 0:                                    # empty edge-list guard
        return jnp.zeros((0,), jnp.float32)

    resident = 2 * _param_bytes((w1a, w1b, b1, w2, b2, w3))
    bytes_per_row = (2 * 2 * hidden * h_src.dtype.itemsize     # two streamed [E,H] tiles
                     + 2 * 4                                   # streamed (1, block) out
                     + 4 * hidden * 4)                         # live f32 temps
    block = _pick_block(e, block_n, bytes_per_row, resident)
    grid = pl.cdiv(e, block)

    out = pl.pallas_call(
        _link_score_kernel,
        out_shape=jax.ShapeDtypeStruct((1, e), jnp.float32),   # lane-dense scores
        grid_spec=pltpu.PrefetchScalarGridSpec(
            num_scalar_prefetch=0,
            grid=(grid,),
            in_specs=[
                pl.BlockSpec((block, hidden), lambda i: (i, 0)),    # h[src] row tile
                pl.BlockSpec((block, hidden), lambda i: (i, 0)),    # h[dst] row tile
                _resident(w1a), _resident(w1b), _resident(b1),
                _resident(w2), _resident(b2), _resident(w3),
                pl.BlockSpec(memory_space=pltpu.MemorySpace.SMEM),  # b3 scalar bias
            ],
            out_specs=pl.BlockSpec((1, block), lambda i: (0, i)),   # (1, block) slab
        ),
        compiler_params=pltpu.CompilerParams(
            dimension_semantics=("parallel",),
            vmem_limit_bytes=_vmem_limit(block, bytes_per_row, resident)),
    )(h_src, h_dst, w1a, w1b, b1, w2, b2, w3, b3)
    return out[0]     # [E]; matches torch `.squeeze()`


# ---------------------------------------------------------------------------
# Full LinkPredModel forward (encode + pos/neg edge scoring in ONE scorer call).
# ---------------------------------------------------------------------------
@functools.partial(jax.jit, static_argnames=("block_n",))
def link_pred_forward(x, enc_params, proj_params, pos_edges, neg_edges, *,
                      block_n=1024):
    h = residual_mlp_pallas(x, enc_params, block_n=block_n)          # [N, Hp] bf16

    # Feedback #5: batch pos and neg edges into a single pallas_call.
    src = jnp.concatenate([pos_edges[0], neg_edges[0]])
    dst = jnp.concatenate([pos_edges[1], neg_edges[1]])
    # TODO(synk): the data-dependent gathers stay as XLA ops; they could be moved
    # in-kernel via scalar-prefetched indices + pl.Element BlockSpecs if they ever
    # dominate (their traffic equals the scorer kernel's own input stream).
    h_src = jnp.take(h, src, axis=0)
    h_dst = jnp.take(h, dst, axis=0)
    scores = link_score_pallas(h_src, h_dst, proj_params, block_n=block_n)

    n_pos = pos_edges[0].shape[0]
    return scores[:n_pos], scores[n_pos:]


# ---------------------------------------------------------------------------
# Parameter init (nn.Linear-style uniform, weights stored [in, out], bf16).
# ---------------------------------------------------------------------------
def _linear_params(key, fan_in, w_shape, b_shape):
    kw, kb = jax.random.split(key)
    bound = 1.0 / (fan_in ** 0.5)
    w = jax.random.uniform(kw, w_shape, jnp.float32, -bound, bound)
    b = jax.random.uniform(kb, b_shape, jnp.float32, -bound, bound)
    return w, b


def init_link_pred_params(key, input_dim, hidden_dim):
    """Feedback #6 (partial): the hidden dim is zero-padded to a multiple of 128 when
    hidden_dim >= 128 so every H-sized matmul dim is MXU lane-aligned.  Padded channels
    carry exact-zero weights/biases, so they stay 0 through relu/residual and the scores
    are unchanged.  Below 128 the model is HBM-bound and padding would only inflate
    traffic, so small hidden dims are left as-is.  in_dim is left unpadded so node
    features stream straight from HBM with no wrapper-side pad pass."""
    ks = jax.random.split(key, 6)
    h = hidden_dim
    hp = _round_up(h, 128) if h >= 128 else h
    bf = lambda a: a.astype(jnp.bfloat16)
    pad_c = lambda a: jnp.pad(a, ((0, 0), (0, hp - a.shape[1])))                 # out dim
    pad_rc = lambda a: jnp.pad(a, ((0, hp - a.shape[0]), (0, hp - a.shape[1])))  # both

    # ResidualMLP encoder (n_layers=3): Linear(in,H), Linear(H,H), output Linear(H,H)
    w0, b0 = _linear_params(ks[0], input_dim, (input_dim, h), (1, h))
    w1, b1 = _linear_params(ks[1], h, (h, h), (1, h))
    wo, bo = _linear_params(ks[2], h, (h, h), (1, h))
    enc_params = (bf(pad_c(w0)), pad_c(b0), bf(pad_rc(w1)), pad_c(b1),
                  bf(pad_rc(wo)), pad_c(bo))

    # Projector: Linear(2H,H) -> ReLU -> Linear(H,H) -> ReLU -> Linear(H,1)
    # Feedback #2: W1 is split into the halves that multiply h[src] and h[dst], so the
    # scorer never needs the concatenated [E, 2H] array.
    p1, pb1 = _linear_params(ks[3], 2 * h, (2 * h, h), (1, h))
    p1a, p1b = p1[:h], p1[h:]
    p2, pb2 = _linear_params(ks[4], h, (h, h), (1, h))
    p3, pb3 = _linear_params(ks[5], h, (1, h), (1,))        # W3 kept as a [1, H] row
    proj_params = (bf(pad_rc(p1a)), bf(pad_rc(p1b)), pad_c(pb1),
                   bf(pad_rc(p2)), pad_c(pb2), bf(pad_c(p3)), pb3)
    return enc_params, proj_params


# ---------------------------------------------------------------------------
# Pure-JAX references mirroring the kernel numerics (bf16 operands, f32 accum).
# ---------------------------------------------------------------------------
def _ref_encoder(x, enc_params):
    w0, b0, w1, b1, wo, bo = enc_params
    bf, f32 = jnp.bfloat16, jnp.float32
    h = jnp.maximum(jnp.dot(x.astype(bf), w0, preferred_element_type=f32) + b0, 0.0)
    h = jnp.maximum(jnp.dot(h.astype(bf), w1, preferred_element_type=f32) + b1, 0.0) + h
    h = jnp.maximum(jnp.dot(h.astype(bf), wo, preferred_element_type=f32) + bo, 0.0) + h
    return h.astype(bf)


def _ref_scores(h_src, h_dst, proj_params):
    w1a, w1b, b1, w2, b2, w3, b3 = proj_params
    bf, f32 = jnp.bfloat16, jnp.float32
    h1 = jnp.maximum(jnp.dot(h_src.astype(bf), w1a, preferred_element_type=f32)
                     + jnp.dot(h_dst.astype(bf), w1b, preferred_element_type=f32)
                     + b1, 0.0)
    h2 = jnp.maximum(jnp.dot(h1.astype(bf), w2, preferred_element_type=f32) + b2, 0.0)
    logits = jnp.dot(h2.astype(bf), w3.T, preferred_element_type=f32)[:, 0] + b3[0]
    return jax.nn.sigmoid(logits)


def _ref_link_pred(x, enc_params, proj_params, pos_edges, neg_edges):
    h = _ref_encoder(x, enc_params)

    def score(edges):
        src, dst = edges
        return _ref_scores(jnp.take(h, src, axis=0), jnp.take(h, dst, axis=0),
                           proj_params)

    return score(pos_edges), score(neg_edges)


if __name__ == "__main__":
    key = jax.random.PRNGKey(0)
    k_cfg1, k_cfg2 = jax.random.split(key)

    # --- config 1: tiny shapes, unpadded hidden, multi-tile scorer grid -------------
    num_nodes, input_dim, hidden_dim = 64, 48, 32
    n_pos, n_neg = 100, 120
    kx, kp, k1, k2, k3, k4 = jax.random.split(k_cfg1, 6)

    x = jax.random.normal(kx, (num_nodes, input_dim), jnp.float32)
    pos_edges = (jax.random.randint(k1, (n_pos,), 0, num_nodes),
                 jax.random.randint(k2, (n_pos,), 0, num_nodes))
    neg_edges = (jax.random.randint(k3, (n_neg,), 0, num_nodes),
                 jax.random.randint(k4, (n_neg,), 0, num_nodes))
    enc_params, proj_params = init_link_pred_params(kp, input_dim, hidden_dim)

    scores_pos, scores_neg = jax.block_until_ready(
        link_pred_forward(x, enc_params, proj_params, pos_edges, neg_edges))
    assert scores_pos.shape == (n_pos,) and scores_neg.shape == (n_neg,)

    ref_pos, ref_neg = _ref_link_pred(x, enc_params, proj_params, pos_edges, neg_edges)
    assert jnp.allclose(scores_pos, ref_pos, atol=2e-3, rtol=2e-3), "pos score mismatch"
    assert jnp.allclose(scores_neg, ref_neg, atol=2e-3, rtol=2e-3), "neg score mismatch"

    h = jax.block_until_ready(residual_mlp_pallas(x, enc_params))
    h_ref = _ref_encoder(x, enc_params)
    assert jnp.allclose(h.astype(jnp.float32), h_ref.astype(jnp.float32),
                        atol=2e-2, rtol=2e-2), "encoder mismatch"

    # --- config 2: padded hidden (160 -> 256), unaligned in_dim, partial tail blocks --
    n2, in2, hid2 = 300, 130, 160
    kx2, kp2, e1, e2, e3, e4 = jax.random.split(k_cfg2, 6)
    x2 = jax.random.normal(kx2, (n2, in2), jnp.float32)
    pos2 = (jax.random.randint(e1, (180,), 0, n2),
            jax.random.randint(e2, (180,), 0, n2))
    neg2 = (jax.random.randint(e3, (200,), 0, n2),
            jax.random.randint(e4, (200,), 0, n2))
    ep2, pp2 = init_link_pred_params(kp2, in2, hid2)

    sp2, sn2 = jax.block_until_ready(
        link_pred_forward(x2, ep2, pp2, pos2, neg2, block_n=256))
    rp2, rn2 = _ref_link_pred(x2, ep2, pp2, pos2, neg2)
    assert sp2.shape == (180,) and sn2.shape == (200,)
    assert jnp.allclose(sp2, rp2, atol=2e-3, rtol=2e-3), "padded pos score mismatch"
    assert jnp.allclose(sn2, rn2, atol=2e-3, rtol=2e-3), "padded neg score mismatch"

    print("KERNEL_OK")
</pallas_src>

<mosaic_0001>
module attributes {stable_mosaic.version = 11 : i64} {
  func.func @_residual_mlp_kernel(%arg0: i32, %arg1: memref<128x48xf32, #tpu.memory_space<vmem>>, %arg2: memref<48x32xbf16, #tpu.memory_space<vmem>>, %arg3: memref<1x32xf32, #tpu.memory_space<vmem>>, %arg4: memref<32x32xbf16, #tpu.memory_space<vmem>>, %arg5: memref<1x32xf32, #tpu.memory_space<vmem>>, %arg6: memref<32x32xbf16, #tpu.memory_space<vmem>>, %arg7: memref<1x32xf32, #tpu.memory_space<vmem>>, %arg8: memref<128x32xbf16, #tpu.memory_space<vmem>>) attributes {dimension_semantics = [#tpu.dimension_semantics<parallel>], iteration_bounds = array<i64: 1>, scalar_prefetch = 0 : i64, scratch_operands = 0 : i64, tpu.core_type = #tpu.core_type<tc>, window_params = [{transform_indices = @transform_0, window_bounds = array<i64: 128, 48>}, {pipeline_mode = #tpu.pipeline_mode<synchronous>, transform_indices = @transform_1, window_bounds = array<i64: 48, 32>}, {pipeline_mode = #tpu.pipeline_mode<synchronous>, transform_indices = @transform_2, window_bounds = array<i64: 1, 32>}, {pipeline_mode = #tpu.pipeline_mode<synchronous>, transform_indices = @transform_3, window_bounds = array<i64: 32, 32>}, {pipeline_mode = #tpu.pipeline_mode<synchronous>, transform_indices = @transform_4, window_bounds = array<i64: 1, 32>}, {pipeline_mode = #tpu.pipeline_mode<synchronous>, transform_indices = @transform_5, window_bounds = array<i64: 32, 32>}, {pipeline_mode = #tpu.pipeline_mode<synchronous>, transform_indices = @transform_6, window_bounds = array<i64: 1, 32>}, {transform_indices = @transform_7, window_bounds = array<i64: 128, 32>}]} {
    %c0 = arith.constant 0 : index
    %c0_0 = arith.constant 0 : index
    %0 = vector.load %arg1[%c0, %c0_0] : memref<128x48xf32, #tpu.memory_space<vmem>>, vector<128x48xf32>
    %1 = arith.truncf %0 : vector<128x48xf32> to vector<128x48xbf16>
    %c0_1 = arith.constant 0 : index
    %c0_2 = arith.constant 0 : index
    %2 = vector.load %arg2[%c0_1, %c0_2] : memref<48x32xbf16, #tpu.memory_space<vmem>>, vector<48x32xbf16>
    %cst = arith.constant dense<0.000000e+00> : vector<128x32xf32>
    %3 = tpu.matmul %1, %2, %cst {dimension_numbers = #tpu.dot_dimension_numbers<[1], [0], [0], [1], [0, 0, 1, 1], [], []>} : vector<128x48xbf16>, vector<48x32xbf16>, vector<128x32xf32> -> vector<128x32xf32>
    %c0_3 = arith.constant 0 : index
    %c0_4 = arith.constant 0 : index
    %4 = vector.load %arg3[%c0_3, %c0_4] : memref<1x32xf32, #tpu.memory_space<vmem>>, vector<1x32xf32>
    %5 = vector.broadcast %4 : vector<1x32xf32> to vector<128x32xf32>
    %6 = arith.addf %3, %5 : vector<128x32xf32>
    %cst_5 = arith.constant 0.000000e+00 : f32
    %7 = vector.broadcast %cst_5 : f32 to vector<128x32xf32>
    %8 = arith.maximumf %6, %7 : vector<128x32xf32>
    %9 = arith.truncf %8 : vector<128x32xf32> to vector<128x32xbf16>
    %c0_6 = arith.constant 0 : index
    %c0_7 = arith.constant 0 : index
    %10 = vector.load %arg4[%c0_6, %c0_7] : memref<32x32xbf16, #tpu.memory_space<vmem>>, vector<32x32xbf16>
    %cst_8 = arith.constant dense<0.000000e+00> : vector<128x32xf32>
    %11 = tpu.matmul %9, %10, %cst_8 {dimension_numbers = #tpu.dot_dimension_numbers<[1], [0], [0], [1], [0, 0, 1, 1], [], []>} : vector<128x32xbf16>, vector<32x32xbf16>, vector<128x32xf32> -> vector<128x32xf32>
    %c0_9 = arith.constant 0 : index
    %c0_10 = arith.constant 0 : index
    %12 = vector.load %arg5[%c0_9, %c0_10] : memref<1x32xf32, #tpu.memory_space<vmem>>, vector<1x32xf32>
    %13 = vector.broadcast %12 : vector<1x32xf32> to vector<128x32xf32>
    %14 = arith.addf %11, %13 : vector<128x32xf32>
    %cst_11 = arith.constant 0.000000e+00 : f32
    %15 = vector.broadcast %cst_11 : f32 to vector<128x32xf32>
    %16 = arith.maximumf %14, %15 : vector<128x32xf32>
    %17 = arith.addf %16, %8 : vector<128x32xf32>
    %18 = arith.truncf %17 : vector<128x32xf32> to vector<128x32xbf16>
    %c0_12 = arith.constant 0 : index
    %c0_13 = arith.constant 0 : index
    %19 = vector.load %arg6[%c0_12, %c0_13] : memref<32x32xbf16, #tpu.memory_space<vmem>>, vector<32x32xbf16>
    %cst_14 = arith.constant dense<0.000000e+00> : vector<128x32xf32>
    %20 = tpu.matmul %18, %19, %cst_14 {dimension_numbers = #tpu.dot_dimension_numbers<[1], [0], [0], [1], [0, 0, 1, 1], [], []>} : vector<128x32xbf16>, vector<32x32xbf16>, vector<128x32xf32> -> vector<128x32xf32>
    %c0_15 = arith.constant 0 : index
    %c0_16 = arith.constant 0 : index
    %21 = vector.load %arg7[%c0_15, %c0_16] : memref<1x32xf32, #tpu.memory_space<vmem>>, vector<1x32xf32>
    %22 = vector.broadcast %21 : vector<1x32xf32> to vector<128x32xf32>
    %23 = arith.addf %20, %22 : vector<128x32xf32>
    %cst_17 = arith.constant 0.000000e+00 : f32
    %24 = vector.broadcast %cst_17 : f32 to vector<128x32xf32>
    %25 = arith.maximumf %23, %24 : vector<128x32xf32>
    %26 = arith.addf %25, %17 : vector<128x32xf32>
    %27 = arith.truncf %26 : vector<128x32xf32> to vector<128x32xbf16>
    %c0_18 = arith.constant 0 : index
    %c0_19 = arith.constant 0 : index
    %28 = vector.load %arg8[%c0_18, %c0_19] : memref<128x32xbf16, #tpu.memory_space<vmem>>, vector<128x32xbf16>
    tpu.vector_store %arg8[%c0_18, %c0_19], %27 {strides = array<i32>} : memref<128x32xbf16, #tpu.memory_space<vmem>>, vector<128x32xbf16>,
    return
  }
  func.func @transform_0(%arg0: i32) -> (i32, i32) {
    %c0_i32 = arith.constant 0 : i32
    %c0_i32_0 = arith.constant 0 : i32
    return %arg0, %c0_i32 : i32, i32
  }
  func.func @transform_1(%arg0: i32) -> (i32, i32) {
    %c0_i32 = arith.constant 0 : i32
    %c0_i32_0 = arith.constant 0 : i32
    %c0_i32_1 = arith.constant 0 : i32
    return %c0_i32, %c0_i32_0 : i32, i32
  }
  func.func @transform_2(%arg0: i32) -> (i32, i32) {
    %c0_i32 = arith.constant 0 : i32
    %c0_i32_0 = arith.constant 0 : i32
    %c0_i32_1 = arith.constant 0 : i32
    return %c0_i32, %c0_i32_0 : i32, i32
  }
  func.func @transform_3(%arg0: i32) -> (i32, i32) {
    %c0_i32 = arith.constant 0 : i32
    %c0_i32_0 = arith.constant 0 : i32
    %c0_i32_1 = arith.constant 0 : i32
    return %c0_i32, %c0_i32_0 : i32, i32
  }
  func.func @transform_4(%arg0: i32) -> (i32, i32) {
    %c0_i32 = arith.constant 0 : i32
    %c0_i32_0 = arith.constant 0 : i32
    %c0_i32_1 = arith.constant 0 : i32
    return %c0_i32, %c0_i32_0 : i32, i32
  }
  func.func @transform_5(%arg0: i32) -> (i32, i32) {
    %c0_i32 = arith.constant 0 : i32
    %c0_i32_0 = arith.constant 0 : i32
    %c0_i32_1 = arith.constant 0 : i32
    return %c0_i32, %c0_i32_0 : i32, i32
  }
  func.func @transform_6(%arg0: i32) -> (i32, i32) {
    %c0_i32 = arith.constant 0 : i32
    %c0_i32_0 = arith.constant 0 : i32
    %c0_i32_1 = arith.constant 0 : i32
    return %c0_i32, %c0_i32_0 : i32, i32
  }
  func.func @transform_7(%arg0: i32) -> (i32, i32) {
    %c0_i32 = arith.constant 0 : i32
    %c0_i32_0 = arith.constant 0 : i32
    return %arg0, %c0_i32 : i32, i32
  }
}

</mosaic_0001>

<llo_original>
// kernel: residual_mlp_pallas.1
$region0: #{residual_mlp_pallas.1}
  #allocation0 [shape = 'u32[]', space=smem, size = 0x4, offset = 0x4, fixed_abs, tag = 'smem constant byte address 0x4 - core index']
  #allocation1 [shape = 'u32[144,128]{1,0:T(1,128)}', space=vmem, size = 0x12000, scoped, tag = 'internal scratch']
  %s0 = inlined_call_operand.vmem [shape: f32[64,48], index: 0, kind: input, shape index: {}]
  %s1 = inlined_call_operand.vmem [shape: bf16[48,32], index: 1, kind: input, shape index: {}]
  %s2 = inlined_call_operand.vmem [shape: f32[1,32], index: 2, kind: input, shape index: {}]
  %s3 = inlined_call_operand.vmem [shape: bf16[32,32], index: 3, kind: input, shape index: {}]
  %s4 = inlined_call_operand.vmem [shape: f32[1,32], index: 4, kind: input, shape index: {}]
  %s5 = inlined_call_operand.vmem [shape: bf16[32,32], index: 5, kind: input, shape index: {}]
  %s6 = inlined_call_operand.vmem [shape: f32[1,32], index: 6, kind: input, shape index: {}]
  %s7 = inlined_call_operand.vmem [shape: bf16[64,32], index: 7, kind: output, shape index: {}]
  %s8 = sld [smem:[#allocation0]]
  $region75: #{residual_mlp_pallas.1} parent=0
    _
  %s10 = ssub.s32 1, %s8
  %s11 = scalar_select 0, %s10, %s8
  $region1: #{residual_mlp_pallas.1} parent=0
    #allocation2 [shape = 'u8[32768]{0}', space=vmem, size = 0x8000, scoped, tag = 'output window, operand 0, single buffered']
    // Predicated region
    $region2: #{residual_mlp_pallas.1} parent=1 // pred_check
      _
    $region3: #{residual_mlp_pallas.1} parent=1 // pred_check_branch
      %13 = sbr.rel (0) target = $region5
    $region4: #{residual_mlp_pallas.1} parent=1 // pred_region
      _
    $region5: #{residual_mlp_pallas.1} parent=1 // pred_fallthru
      _
    // Predicated region
    $region6: #{residual_mlp_pallas.1} parent=1 // pred_check
      _
    $region7: #{residual_mlp_pallas.1} parent=1 // pred_check_branch
      %15 = sbr.rel (0) target = $region9
    $region8: #{residual_mlp_pallas.1} parent=1 // pred_region
      _
    $region9: #{residual_mlp_pallas.1} parent=1 // pred_fallthru
      _
    // Predicated region
    $region10: #{residual_mlp_pallas.1} parent=1 // pred_check
      _
    $region11: #{residual_mlp_pallas.1} parent=1 // pred_check_branch
      %17 = sbr.rel (0) target = $region13
    $region12: #{residual_mlp_pallas.1} parent=1 // pred_region
      _
    $region13: #{residual_mlp_pallas.1} parent=1 // pred_fallthru
      _
    // Predicated region
    $region14: #{residual_mlp_pallas.1} parent=1 // pred_check
      _
    $region15: #{residual_mlp_pallas.1} parent=1 // pred_check_branch
      %19 = sbr.rel (0) target = $region17
    $region16: #{residual_mlp_pallas.1} parent=1 // pred_region
      _
    $region17: #{residual_mlp_pallas.1} parent=1 // pred_fallthru
      _
    // Predicated region
    $region18: #{residual_mlp_pallas.1} parent=1 // pred_check
      _
    $region19: #{residual_mlp_pallas.1} parent=1 // pred_check_branch
      %21 = sbr.rel (0) target = $region21
    $region20: #{residual_mlp_pallas.1} parent=1 // pred_region
      _
    $region21: #{residual_mlp_pallas.1} parent=1 // pred_fallthru
      _
    // Predicated region
    $region22: #{residual_mlp_pallas.1} parent=1 // pred_check
      _
    $region23: #{residual_mlp_pallas.1} parent=1 // pred_check_branch
      %23 = sbr.rel (0) target = $region25
    $region24: #{residual_mlp_pallas.1} parent=1 // pred_region
      _
    $region25: #{residual_mlp_pallas.1} parent=1 // pred_fallthru
      _
    // Predicated region
    $region26: #{residual_mlp_pallas.1} parent=1 // pred_check
      _
    $region27: #{residual_mlp_pallas.1} parent=1 // pred_check_branch
      %25 = sbr.rel (0) target = $region29
    $region28: #{residual_mlp_pallas.1} parent=1 // pred_region
      _
    $region29: #{residual_mlp_pallas.1} parent=1 // pred_fallthru
      _
    %v27 = vld [vmem:[%s0] sm:$0xff]
    %v28 = vld [vmem:[%s0 + $0x8] sm:$0xff]
    %v29 = vld [vmem:[%s0 + $0x10] sm:$0xff]
    %v30 = vld [vmem:[%s0 + $0x18] sm:$0xff]
    %v31 = vld [vmem:[%s0 + $0x20] sm:$0xff]
    %v32 = vld [vmem:[%s0 + $0x28] sm:$0xff]
    %v33 = vld [vmem:[%s0 + $0x30] sm:$0xff]
    %v34 = vld [vmem:[%s0 + $0x38] sm:$0xff]
    %v35 = vld [vmem:[%s0 + $0x40] sm:$0xff]
    %v36 = vld [vmem:[%s0 + $0x48] sm:$0xff]
    %v37 = vld [vmem:[%s0 + $0x50] sm:$0xff]
    %v38 = vld [vmem:[%s0 + $0x58] sm:$0xff]
    %v39 = vld [vmem:[%s0 + $0x60] sm:$0xff]
    %v40 = vld [vmem:[%s0 + $0x68] sm:$0xff]
    %v41 = vld [vmem:[%s0 + $0x70] sm:$0xff]
    %v42 = vld [vmem:[%s0 + $0x78] sm:$0xff]
    %v43 = vpack.c.bf16 %v28, %v27
    %v44 = vpack.c.bf16 %v30, %v29
    %v45 = vpack.c.bf16 %v32, %v31
    %v46 = vpack.c.bf16 %v34, %v33
    %v47 = vpack.c.bf16 %v36, %v35
    %v48 = vpack.c.bf16 %v38, %v37
    %v49 = vpack.c.bf16 %v40, %v39
    %v50 = vpack.c.bf16 %v42, %v41
    %v51 = vld [vmem:[%s1] sm:$0xf]
    %v52 = vld [vmem:[%s1 + $0x4] sm:$0xf]
    %v53 = vld [vmem:[%s1 + $0x8] sm:$0xf]
    %v54 = vld [vmem:[%s1 + $0xc] sm:$0xf]
    %v55 = vld [vmem:[%s1 + $0x10] sm:$0xf]
    %v56 = vld [vmem:[%s1 + $0x14] sm:$0xf]
    %v57 = vld [vmem:[%s2] sm:$0x1]
    %v59 = vlaneseq
    %v60 = vshrl.u32 %v59, 7
    %v61 = vsub.s32 0, %v60
    %v62 = vrot.slane %v57, %v61
    %v70 = vunpack.c.l.b16 %v51
    %v71 = vunpack.c.l.b16 %v52
    %v72 = vunpack.c.l.b16 %v53
    %v73 = vunpack.c.l.b16 %v54
    %v74 = vunpack.c.l.b16 %v55
    %v75 = vunpack.c.l.b16 %v56
    %v76 = vpack.c.b16 %v71, %v70
    %v77 = vpack.c.b16 %v73, %v72
    %v78 = vpack.c.b16 %v75, %v74
    %vm82 = vcmask 392192
    %v84 = vsel %vm82, %v43, 0
    %v87 = vsel %vm82, %v44, 0
    %v90 = vsel %vm82, %v45, 0
    %v93 = vsel %vm82, %v46, 0
    %v96 = vsel %vm82, %v47, 0
    %v99 = vsel %vm82, %v48, 0
    %v102 = vsel %vm82, %v49, 0
    %v105 = vsel %vm82, %v50, 0
    %107 = vmatprep.subr.bf16.mxu0 0
    %108 = vmatpush1.bf16.msra.mxu0 %v76
    %109 = vmatprep.subr.bf16.mxu0 0
    %110 = vmatpush1.bf16.msra.mxu0 %v77
    %111 = vmatprep.subr.bf16.mxu0 0
    %112 = vmatpush1.bf16.msra.mxu0 %v78
    %113 = vmatprep.subr.bf16.mxu0 0
    %114 = vmatpush1.bf16.msra.mxu0 0
    %115 = vmatprep.subr.bf16.mxu0 0
    %116 = vmatpush1.bf16.msra.mxu0 0
    %117 = vmatprep.subr.bf16.mxu0 0
    %118 = vmatpush1.bf16.msra.mxu0 0
    %119 = vmatprep.subr.bf16.mxu0 0
    %120 = vmatpush1.bf16.msra.mxu0 0
    %121 = vmatprep.subr.bf16.mxu0 0
    %122 = vmatpush1.bf16.msra.mxu0 0
    %123 = vmatprep.subr.bf16.mxu0 0
    %124 = vmatpush1.bf16.msra.mxu0 0
    %125 = vmatprep.subr.bf16.mxu0 0
    %126 = vmatpush1.bf16.msra.mxu0 0
    %127 = vmatprep.subr.bf16.mxu0 0
    %128 = vmatpush1.bf16.msra.mxu0 0
    %129 = vmatprep.subr.bf16.mxu0 0
    %130 = vmatpush1.bf16.msra.mxu0 0
    %131 = vmatprep.subr.bf16.mxu0 0
    %132 = vmatpush1.bf16.msra.mxu0 0
    %133 = vmatprep.subr.bf16.mxu0 0
    %134 = vmatpush1.bf16.msra.mxu0 0
    %135 = vmatprep.subr.bf16.mxu0 0
    %136 = vmatpush1.bf16.msra.mxu0 0
    %137 = vmatprep.subr.bf16.mxu0 0
    %138 = vmatpush1.bf16.msra.mxu0 0
    %139 = vmatprep.mubr.bf16.mxu0 0
    %140 = vmatmul.mubr.bf16.gmra.mrb[0].mxu0 %v84
    %v141 = vpop.f32.mrb[0].mxu0
    %v142 = vadd.f32 %v62, %v141
    %v143 = vpop.f32.mrb[0].mxu0
    %v144 = vpop.f32.mrb[0].mxu0
    %v145 = vadd.f32 %v62, %v144
    %v146 = vpop.f32.mrb[0].mxu0
    %147 = vmatprep.mubr.bf16.mxu0 0
    %148 = vmatmul.mubr.bf16.gmra.mrb[0].mxu0 %v87
    %v149 = vpop.f32.mrb[0].mxu0
    %v150 = vadd.f32 %v62, %v149
    %v151 = vpop.f32.mrb[0].mxu0
    %v152 = vpop.f32.mrb[0].mxu0
    %v153 = vadd.f32 %v62, %v152
    %v154 = vpop.f32.mrb[0].mxu0
    %155 = vmatprep.mubr.bf16.mxu0 0
    %156 = vmatmul.mubr.bf16.gmra.mrb[0].mxu0 %v90
    %v157 = vpop.f32.mrb[0].mxu0
    %v158 = vadd.f32 %v62, %v157
    %v159 = vpop.f32.mrb[0].mxu0
    %v160 = vpop.f32.mrb[0].mxu0
    %v161 = vadd.f32 %v62, %v160
    %v162 = vpop.f32.mrb[0].mxu0
    %163 = vmatprep.mubr.bf16.mxu0 0
    %164 = vmatmul.mubr.bf16.gmra.mrb[0].mxu0 %v93
    %v165 = vpop.f32.mrb[0].mxu0
    %v166 = vadd.f32 %v62, %v165
    %v167 = vpop.f32.mrb[0].mxu0
    %v168 = vpop.f32.mrb[0].mxu0
    %v169 = vadd.f32 %v62, %v168
    %v170 = vpop.f32.mrb[0].mxu0
    %171 = vmatprep.mubr.bf16.mxu0 0
    %172 = vmatmul.mubr.bf16.gmra.mrb[0].mxu0 %v96
    %v173 = vpop.f32.mrb[0].mxu0
    %v174 = vadd.f32 %v62, %v173
    %v175 = vpop.f32.mrb[0].mxu0
    %v176 = vpop.f32.mrb[0].mxu0
    %v177 = vadd.f32 %v62, %v176
    %v178 = vpop.f32.mrb[0].mxu0
    %179 = vmatprep.mubr.bf16.mxu0 0
    %180 = vmatmul.mubr.bf16.gmra.mrb[0].mxu0 %v99
    %v181 = vpop.f32.mrb[0].mxu0
    %v182 = vadd.f32 %v62, %v181
    %v183 = vpop.f32.mrb[0].mxu0
    %v184 = vpop.f32.mrb[0].mxu0
    %v185 = vadd.f32 %v62, %v184
    %v186 = vpop.f32.mrb[0].mxu0
    %187 = vmatprep.mubr.bf16.mxu0 0
    %188 = vmatmul.mubr.bf16.gmra.mrb[0].mxu0 %v102
    %v189 = vpop.f32.mrb[0].mxu0
    %v190 = vadd.f32 %v62, %v189
    %v191 = vpop.f32.mrb[0].mxu0
    %v192 = vpop.f32.mrb[0].mxu0
    %v193 = vadd.f32 %v62, %v192
    %v194 = vpop.f32.mrb[0].mxu0
    %195 = vmatprep.mubr.bf16.mxu0 0
    %196 = vmatmul.mubr.bf16.gmra.mrb[0].mxu0 %v105
    %v197 = vpop.f32.mrb[0].mxu0
    %v198 = vadd.f32 %v62, %v197
    %v199 = vpop.f32.mrb[0].mxu0
    %v200 = vpop.f32.mrb[0].mxu0
    %v201 = vadd.f32 %v62, %v200
    %v202 = vpop.f32.mrb[0].mxu0
    %203 = vdwg.mxu0
    %v204 = vmax.f32 %v142, 0.0
    %v205 = vmax.f32 %v145, 0.0
    %v206 = vmax.f32 %v150, 0.0
    %v207 = vmax.f32 %v153, 0.0
    %v208 = vmax.f32 %v158, 0.0
    %v209 = vmax.f32 %v161, 0.0
    %v210 = vmax.f32 %v166, 0.0
    %v211 = vmax.f32 %v169, 0.0
    %v212 = vmax.f32 %v174, 0.0
    %v213 = vmax.f32 %v177, 0.0
    %v214 = vmax.f32 %v182, 0.0
    %v215 = vmax.f32 %v185, 0.0
    %v216 = vmax.f32 %v190, 0.0
    %v217 = vmax.f32 %v193, 0.0
    %v218 = vmax.f32 %v198, 0.0
    %v219 = vmax.f32 %v201, 0.0
    %v220 = vpack.c.bf16 %v205, %v204
    %v221 = vpack.c.bf16 %v207, %v206
    %v222 = vpack.c.bf16 %v209, %v208
    %v223 = vpack.c.bf16 %v211, %v210
    %v224 = vpack.c.bf16 %v213, %v212
    %v225 = vpack.c.bf16 %v215, %v214
    %v226 = vpack.c.bf16 %v217, %v216
    %v227 = vpack.c.bf16 %v219, %v218
    %v228 = vld [vmem:[%s3] sm:$0xf]
    %v229 = vld [vmem:[%s3 + $0x4] sm:$0xf]
    %v230 = vld [vmem:[%s3 + $0x8] sm:$0xf]
    %v231 = vld [vmem:[%s3 + $0xc] sm:$0xf]
    %v232 = vld [vmem:[%s4] sm:$0x1]
    %v234 = vlaneseq
    %v235 = vshrl.u32 %v234, 7
    %v236 = vsub.s32 0, %v235
    %v237 = vrot.slane %v232, %v236
    %v243 = vunpack.c.l.b16 %v228
    %v244 = vunpack.c.l.b16 %v229
    %v245 = vunpack.c.l.b16 %v230
    %v246 = vunpack.c.l.b16 %v231
    %v247 = vpack.c.b16 %v244, %v243
    %v248 = vpack.c.b16 %v246, %v245
    %vm251 = vcmask 261120
    %v253 = vsel %vm251, %v220, 0
    %v256 = vsel %vm251, %v221, 0
    %v259 = vsel %vm251, %v222, 0
    %v262 = vsel %vm251, %v223, 0
    %v265 = vsel %vm251, %v224, 0
    %v268 = vsel %vm251, %v225, 0
    %v271 = vsel %vm251, %v226, 0
    %v274 = vsel %vm251, %v227, 0
    %276 = vmatprep.subr.bf16.mxu0 0
    %277 = vmatpush1.bf16.msra.mxu0 %v247
    %278 = vmatprep.subr.bf16.mxu0 0
    %279 = vmatpush1.bf16.msra.mxu0 %v248
    %280 = vmatprep.subr.bf16.mxu0 0
    %281 = vmatpush1.bf16.msra.mxu0 0
    %282 = vmatprep.subr.bf16.mxu0 0
    %283 = vmatpush1.bf16.msra.mxu0 0
    %284 = vmatprep.subr.bf16.mxu0 0
    %285 = vmatpush1.bf16.msra.mxu0 0
    %286 = vmatprep.subr.bf16.mxu0 0
    %287 = vmatpush1.bf16.msra.mxu0 0
    %288 = vmatprep.subr.bf16.mxu0 0
    %289 = vmatpush1.bf16.msra.mxu0 0
    %290 = vmatprep.subr.bf16.mxu0 0
    %291 = vmatpush1.bf16.msra.mxu0 0
    %292 = vmatprep.subr.bf16.mxu0 0
    %293 = vmatpush1.bf16.msra.mxu0 0
    %294 = vmatprep.subr.bf16.mxu0 0
    %295 = vmatpush1.bf16.msra.mxu0 0
    %296 = vmatprep.subr.bf16.mxu0 0
    %297 = vmatpush1.bf16.msra.mxu0 0
    %298 = vmatprep.subr.bf16.mxu0 0
    %299 = vmatpush1.bf16.msra.mxu0 0
    %300 = vmatprep.subr.bf16.mxu0 0
    %301 = vmatpush1.bf16.msra.mxu0 0
    %302 = vmatprep.subr.bf16.mxu0 0
    %303 = vmatpush1.bf16.msra.mxu0 0
    %304 = vmatprep.subr.bf16.mxu0 0
    %305 = vmatpush1.bf16.msra.mxu0 0
    %306 = vmatprep.subr.bf16.mxu0 0
    %307 = vmatpush1.bf16.msra.mxu0 0
    %308 = vmatprep.mubr.bf16.mxu0 0
    %309 = vmatmul.mubr.bf16.gmra.mrb[0].mxu0 %v253
    %v310 = vpop.f32.mrb[0].mxu0
    %v311 = vadd.f32 %v237, %v310
    %v312 = vpop.f32.mrb[0].mxu0
    %v313 = vpop.f32.mrb[0].mxu0
    %v314 = vadd.f32 %v237, %v313
    %v315 = vpop.f32.mrb[0].mxu0
    %316 = vmatprep.mubr.bf16.mxu0 0
    %317 = vmatmul.mubr.bf16.gmra.mrb[0].mxu0 %v256
    %v318 = vpop.f32.mrb[0].mxu0
    %v319 = vadd.f32 %v237, %v318
    %v320 = vpop.f32.mrb[0].mxu0
    %v321 = vpop.f32.mrb[0].mxu0
    %v322 = vadd.f32 %v237, %v321
    %v323 = vpop.f32.mrb[0].mxu0
    %324 = vmatprep.mubr.bf16.mxu0 0
    %325 = vmatmul.mubr.bf16.gmra.mrb[0].mxu0 %v259
    %v326 = vpop.f32.mrb[0].mxu0
    %v327 = vadd.f32 %v237, %v326
    %v328 = vpop.f32.mrb[0].mxu0
    %v329 = vpop.f32.mrb[0].mxu0
    %v330 = vadd.f32 %v237, %v329
    %v331 = vpop.f32.mrb[0].mxu0
    %332 = vmatprep.mubr.bf16.mxu0 0
    %333 = vmatmul.mubr.bf16.gmra.mrb[0].mxu0 %v262
    %v334 = vpop.f32.mrb[0].mxu0
    %v335 = vadd.f32 %v237, %v334
    %v336 = vpop.f32.mrb[0].mxu0
    %v337 = vpop.f32.mrb[0].mxu0
    %v338 = vadd.f32 %v237, %v337
    %v339 = vpop.f32.mrb[0].mxu0
    %340 = vmatprep.mubr.bf16.mxu0 0
    %341 = vmatmul.mubr.bf16.gmra.mrb[0].mxu0 %v265
    %v342 = vpop.f32.mrb[0].mxu0
    %v343 = vadd.f32 %v237, %v342
    %v344 = vpop.f32.mrb[0].mxu0
    %v345 = vpop.f32.mrb[0].mxu0
    %v346 = vadd.f32 %v237, %v345
    %v347 = vpop.f32.mrb[0].mxu0
    %348 = vmatprep.mubr.bf16.mxu0 0
    %349 = vmatmul.mubr.bf16.gmra.mrb[0].mxu0 %v268
    %v350 = vpop.f32.mrb[0].mxu0
    %v351 = vadd.f32 %v237, %v350
    %v352 = vpop.f32.mrb[0].mxu0
    %v353 = vpop.f32.mrb[0].mxu0
    %v354 = vadd.f32 %v237, %v353
    %v355 = vpop.f32.mrb[0].mxu0
    %356 = vmatprep.mubr.bf16.mxu0 0
    %357 = vmatmul.mubr.bf16.gmra.mrb[0].mxu0 %v271
    %v358 = vpop.f32.mrb[0].mxu0
    %v359 = vadd.f32 %v237, %v358
    %v360 = vpop.f32.mrb[0].mxu0
    %v361 = vpop.f32.mrb[0].mxu0
    %v362 = vadd.f32 %v237, %v361
    %v363 = vpop.f32.mrb[0].mxu0
    %364 = vmatprep.mubr.bf16.mxu0 0
    %365 = vmatmul.mubr.bf16.gmra.mrb[0].mxu0 %v274
    %v366 = vpop.f32.mrb[0].mxu0
    %v367 = vadd.f32 %v237, %v366
    %v368 = vpop.f32.mrb[0].mxu0
    %v369 = vpop.f32.mrb[0].mxu0
    %v370 = vadd.f32 %v237, %v369
    %v371 = vpop.f32.mrb[0].mxu0
    %372 = vdwg.mxu0
    %v373 = vmax.f32 %v311, 0.0
    %v374 = vmax.f32 %v314, 0.0
    %v375 = vmax.f32 %v319, 0.0
    %v376 = vmax.f32 %v322, 0.0
    %v377 = vmax.f32 %v327, 0.0
    %v378 = vmax.f32 %v330, 0.0
    %v379 = vmax.f32 %v335, 0.0
    %v380 = vmax.f32 %v338, 0.0
    %v381 = vmax.f32 %v343, 0.0
    %v382 = vmax.f32 %v346, 0.0
    %v383 = vmax.f32 %v351, 0.0
    %v384 = vmax.f32 %v354, 0.0
    %v385 = vmax.f32 %v359, 0.0
    %v386 = vmax.f32 %v362, 0.0
    %v387 = vmax.f32 %v367, 0.0
    %v388 = vmax.f32 %v370, 0.0
    %v389 = vadd.f32 %v373, %v204
    %v390 = vadd.f32 %v374, %v205
    %v391 = vadd.f32 %v375, %v206
    %v392 = vadd.f32 %v376, %v207
    %v393 = vadd.f32 %v377, %v208
    %v394 = vadd.f32 %v378, %v209
    %v395 = vadd.f32 %v379, %v210
    %v396 = vadd.f32 %v380, %v211
    %v397 = vadd.f32 %v381, %v212
    %v398 = vadd.f32 %v382, %v213
    %v399 = vadd.f32 %v383, %v214
    %v400 = vadd.f32 %v384, %v215
    %v401 = vadd.f32 %v385, %v216
    %v402 = vadd.f32 %v386, %v217
    %v403 = vadd.f32 %v387, %v218
    %v404 = vadd.f32 %v388, %v219
    %v405 = vpack.c.bf16 %v390, %v389
    %v406 = vpack.c.bf16 %v392, %v391
    %v407 = vpack.c.bf16 %v394, %v393
    %v408 = vpack.c.bf16 %v396, %v395
    %v409 = vpack.c.bf16 %v398, %v397
    %v410 = vpack.c.bf16 %v400, %v399
    %v411 = vpack.c.bf16 %v402, %v401
    %v412 = vpack.c.bf16 %v404, %v403
    %v413 = vld [vmem:[%s5] sm:$0xf]
    %v414 = vld [vmem:[%s5 + $0x4] sm:$0xf]
    %v415 = vld [vmem:[%s5 + $0x8] sm:$0xf]
    %v416 = vld [vmem:[%s5 + $0xc] sm:$0xf]
    %v417 = vld [vmem:[%s6] sm:$0x1]
    %v419 = vlaneseq
    %v420 = vshrl.u32 %v419, 7
    %v421 = vsub.s32 0, %v420
    %v422 = vrot.slane %v417, %v421
    %v428 = vunpack.c.l.b16 %v413
    %v429 = vunpack.c.l.b16 %v414
    %v430 = vunpack.c.l.b16 %v415
    %v431 = vunpack.c.l.b16 %v416
    %v432 = vpack.c.b16 %v429, %v428
    %v433 = vpack.c.b16 %v431, %v430
    %v437 = vsel %vm251, %v405, 0
    %v440 = vsel %vm251, %v406, 0
    %v443 = vsel %vm251, %v407, 0
    %v446 = vsel %vm251, %v408, 0
    %v449 = vsel %vm251, %v409, 0
    %v452 = vsel %vm251, %v410, 0
    %v455 = vsel %vm251, %v411, 0
    %v458 = vsel %vm251, %v412, 0
    %460 = vmatprep.subr.bf16.mxu0 0
    %461 = vmatpush1.bf16.msra.mxu0 %v432
    %462 = vmatprep.subr.bf16.mxu0 0
    %463 = vmatpush1.bf16.msra.mxu0 %v433
    %464 = vmatprep.subr.bf16.mxu0 0
    %465 = vmatpush1.bf16.msra.mxu0 0
    %466 = vmatprep.subr.bf16.mxu0 0
    %467 = vmatpush1.bf16.msra.mxu0 0
    %468 = vmatprep.subr.bf16.mxu0 0
    %469 = vmatpush1.bf16.msra.mxu0 0
    %470 = vmatprep.subr.bf16.mxu0 0
    %471 = vmatpush1.bf16.msra.mxu0 0
    %472 = vmatprep.subr.bf16.mxu0 0
    %473 = vmatpush1.bf16.msra.mxu0 0
    %474 = vmatprep.subr.bf16.mxu0 0
    %475 = vmatpush1.bf16.msra.mxu0 0
    %476 = vmatprep.subr.bf16.mxu0 0
    %477 = vmatpush1.bf16.msra.mxu0 0
    %478 = vmatprep.subr.bf16.mxu0 0
    %479 = vmatpush1.bf16.msra.mxu0 0
    %480 = vmatprep.subr.bf16.mxu0 0
    %481 = vmatpush1.bf16.msra.mxu0 0
    %482 = vmatprep.subr.bf16.mxu0 0
    %483 = vmatpush1.bf16.msra.mxu0 0
    %484 = vmatprep.subr.bf16.mxu0 0
    %485 = vmatpush1.bf16.msra.mxu0 0
    %486 = vmatprep.subr.bf16.mxu0 0
    %487 = vmatpush1.bf16.msra.mxu0 0
    %488 = vmatprep.subr.bf16.mxu0 0
    %489 = vmatpush1.bf16.msra.mxu0 0
    %490 = vmatprep.subr.bf16.mxu0 0
    %491 = vmatpush1.bf16.msra.mxu0 0
    %492 = vmatprep.mubr.bf16.mxu0 0
    %493 = vmatmul.mubr.bf16.gmra.mrb[0].mxu0 %v437
    %v494 = vpop.f32.mrb[0].mxu0
    %v495 = vadd.f32 %v422, %v494
    %v496 = vpop.f32.mrb[0].mxu0
    %v497 = vpop.f32.mrb[0].mxu0
    %v498 = vadd.f32 %v422, %v497
    %v499 = vpop.f32.mrb[0].mxu0
    %500 = vmatprep.mubr.bf16.mxu0 0
    %501 = vmatmul.mubr.bf16.gmra.mrb[0].mxu0 %v440
    %v502 = vpop.f32.mrb[0].mxu0
    %v503 = vadd.f32 %v422, %v502
    %v504 = vpop.f32.mrb[0].mxu0
    %v505 = vpop.f32.mrb[0].mxu0
    %v506 = vadd.f32 %v422, %v505
    %v507 = vpop.f32.mrb[0].mxu0
    %508 = vmatprep.mubr.bf16.mxu0 0
    %509 = vmatmul.mubr.bf16.gmra.mrb[0].mxu0 %v443
    %v510 = vpop.f32.mrb[0].mxu0
    %v511 = vadd.f32 %v422, %v510
    %v512 = vpop.f32.mrb[0].mxu0
    %v513 = vpop.f32.mrb[0].mxu0
    %v514 = vadd.f32 %v422, %v513
    %v515 = vpop.f32.mrb[0].mxu0
    %516 = vmatprep.mubr.bf16.mxu0 0
    %517 = vmatmul.mubr.bf16.gmra.mrb[0].mxu0 %v446
    %v518 = vpop.f32.mrb[0].mxu0
    %v519 = vadd.f32 %v422, %v518
    %v520 = vpop.f32.mrb[0].mxu0
    %v521 = vpop.f32.mrb[0].mxu0
    %v522 = vadd.f32 %v422, %v521
    %v523 = vpop.f32.mrb[0].mxu0
    %524 = vmatprep.mubr.bf16.mxu0 0
    %525 = vmatmul.mubr.bf16.gmra.mrb[0].mxu0 %v449
    %v526 = vpop.f32.mrb[0].mxu0
    %v527 = vadd.f32 %v422, %v526
    %v528 = vpop.f32.mrb[0].mxu0
    %v529 = vpop.f32.mrb[0].mxu0
    %v530 = vadd.f32 %v422, %v529
    %v531 = vpop.f32.mrb[0].mxu0
    %532 = vmatprep.mubr.bf16.mxu0 0
    %533 = vmatmul.mubr.bf16.gmra.mrb[0].mxu0 %v452
    %v534 = vpop.f32.mrb[0].mxu0
    %v535 = vadd.f32 %v422, %v534
    %v536 = vpop.f32.mrb[0].mxu0
    %v537 = vpop.f32.mrb[0].mxu0
    %v538 = vadd.f32 %v422, %v537
    %v539 = vpop.f32.mrb[0].mxu0
    %540 = vmatprep.mubr.bf16.mxu0 0
    %541 = vmatmul.mubr.bf16.gmra.mrb[0].mxu0 %v455
    %v542 = vpop.f32.mrb[0].mxu0
    %v543 = vadd.f32 %v422, %v542
    %v544 = vpop.f32.mrb[0].mxu0
    %v545 = vpop.f32.mrb[0].mxu0
    %v546 = vadd.f32 %v422, %v545
    %v547 = vpop.f32.mrb[0].mxu0
    %548 = vmatprep.mubr.bf16.mxu0 0
    %549 = vmatmul.mubr.bf16.gmra.mrb[0].mxu0 %v458
    %v550 = vpop.f32.mrb[0].mxu0
    %v551 = vadd.f32 %v422, %v550
    %v552 = vpop.f32.mrb[0].mxu0
    %v553 = vpop.f32.mrb[0].mxu0
    %v554 = vadd.f32 %v422, %v553
    %v555 = vpop.f32.mrb[0].mxu0
    %556 = vdwg.mxu0
    %v557 = vmax.f32 %v495, 0.0
    %v558 = vmax.f32 %v498, 0.0
    %v559 = vmax.f32 %v503, 0.0
    %v560 = vmax.f32 %v506, 0.0
    %v561 = vmax.f32 %v511, 0.0
    %v562 = vmax.f32 %v514, 0.0
    %v563 = vmax.f32 %v519, 0.0
    %v564 = vmax.f32 %v522, 0.0
    %v565 = vmax.f32 %v527, 0.0
    %v566 = vmax.f32 %v530, 0.0
    %v567 = vmax.f32 %v535, 0.0
    %v568 = vmax.f32 %v538, 0.0
    %v569 = vmax.f32 %v543, 0.0
    %v570 = vmax.f32 %v546, 0.0
    %v571 = vmax.f32 %v551, 0.0
    %v572 = vmax.f32 %v554, 0.0
    %v573 = vadd.f32 %v557, %v389
    %v574 = vadd.f32 %v558, %v390
    %v575 = vadd.f32 %v559, %v391
    %v576 = vadd.f32 %v560, %v392
    %v577 = vadd.f32 %v561, %v393
    %v578 = vadd.f32 %v562, %v394
    %v579 = vadd.f32 %v563, %v395
    %v580 = vadd.f32 %v564, %v396
    %v581 = vadd.f32 %v565, %v397
    %v582 = vadd.f32 %v566, %v398
    %v583 = vadd.f32 %v567, %v399
    %v584 = vadd.f32 %v568, %v400
    %v585 = vadd.f32 %v569, %v401
    %v586 = vadd.f32 %v570, %v402
    %v587 = vadd.f32 %v571, %v403
    %v588 = vadd.f32 %v572, %v404
    %v589 = vpack.c.bf16 %v574, %v573
    %v590 = vpack.c.bf16 %v576, %v575
    %v591 = vpack.c.bf16 %v578, %v577
    %v592 = vpack.c.bf16 %v580, %v579
    %v593 = vpack.c.bf16 %v582, %v581
    %v594 = vpack.c.bf16 %v584, %v583
    %v595 = vpack.c.bf16 %v586, %v585
    %v596 = vpack.c.bf16 %v588, %v587
    %v605 = vunpack.c.l.b16 %v589
    %v606 = vunpack.c.h.b16 %v589
    %v607 = vunpack.c.l.b16 %v590
    %v608 = vunpack.c.h.b16 %v590
    %v609 = vunpack.c.l.b16 %v591
    %v610 = vunpack.c.h.b16 %v591
    %v611 = vunpack.c.l.b16 %v592
    %v612 = vunpack.c.h.b16 %v592
    %v613 = vunpack.c.l.b16 %v593
    %v614 = vunpack.c.h.b16 %v593
    %v615 = vunpack.c.l.b16 %v594
    %v616 = vunpack.c.h.b16 %v594
    %v617 = vunpack.c.l.b16 %v595
    %v618 = vunpack.c.h.b16 %v595
    %v619 = vunpack.c.l.b16 %v596
    %v620 = vunpack.c.h.b16 %v596
    %v621 = vpack.c.b16 %v605, %v605
    %v622 = vpack.c.b16 %v606, %v606
    %v623 = vpack.c.b16 %v607, %v607
    %v624 = vpack.c.b16 %v608, %v608
    %v625 = vpack.c.b16 %v609, %v609
    %v626 = vpack.c.b16 %v610, %v610
    %v627 = vpack.c.b16 %v611, %v611
    %v628 = vpack.c.b16 %v612, %v612
    %v629 = vpack.c.b16 %v613, %v613
    %v630 = vpack.c.b16 %v614, %v614
    %v631 = vpack.c.b16 %v615, %v615
    %v632 = vpack.c.b16 %v616, %v616
    %v633 = vpack.c.b16 %v617, %v617
    %v634 = vpack.c.b16 %v618, %v618
    %v635 = vpack.c.b16 %v619, %v619
    %v636 = vpack.c.b16 %v620, %v620
    %vm653 = vcmask 257024
    %654 = vst.msk [vmem:[#allocation2] sm:$0xf] %vm653, %v621
    %655 = vst.msk [vmem:[#allocation2 + $0x4] sm:$0xf] %vm653, %v622
    %656 = vst.msk [vmem:[#allocation2 + $0x8] sm:$0xf] %vm653, %v623
    %657 = vst.msk [vmem:[#allocation2 + $0xc] sm:$0xf] %vm653, %v624
    %658 = vst.msk [vmem:[#allocation2 + $0x10] sm:$0xf] %vm653, %v625
    %659 = vst.msk [vmem:[#allocation2 + $0x14] sm:$0xf] %vm653, %v626
    %660 = vst.msk [vmem:[#allocation2 + $0x18] sm:$0xf] %vm653, %v627
    %661 = vst.msk [vmem:[#allocation2 + $0x1c] sm:$0xf] %vm653, %v628
    %662 = vst.msk [vmem:[#allocation2 + $0x20] sm:$0xf] %vm653, %v629
    %663 = vst.msk [vmem:[#allocation2 + $0x24] sm:$0xf] %vm653, %v630
    %664 = vst.msk [vmem:[#allocation2 + $0x28] sm:$0xf] %vm653, %v631
    %665 = vst.msk [vmem:[#allocation2 + $0x2c] sm:$0xf] %vm653, %v632
    %666 = vst.msk [vmem:[#allocation2 + $0x30] sm:$0xf] %vm653, %v633
    %667 = vst.msk [vmem:[#allocation2 + $0x34] sm:$0xf] %vm653, %v634
    %668 = vst.msk [vmem:[#allocation2 + $0x38] sm:$0xf] %vm653, %v635
    %669 = vst.msk [vmem:[#allocation2 + $0x3c] sm:$0xf] %vm653, %v636
    // Predicated region
    $region30: #{residual_mlp_pallas.1} parent=1 // pred_check
      _
    $region31: #{residual_mlp_pallas.1} parent=1 // pred_check_branch
      %671 = sbr.rel (0) target = $region33
    $region32: #{residual_mlp_pallas.1} parent=1 // pred_region
      // Predicated region
      $region34: #{residual_mlp_pallas.1} parent=32 // pred_check
        _
      $region35: #{residual_mlp_pallas.1} parent=32 // pred_check_branch
        %673 = sbr.rel (0) target = $region37
      $region36: #{residual_mlp_pallas.1} parent=32 // pred_region
        // Predicated region
        $region38: #{residual_mlp_pallas.1} parent=36 // pred_check
          _
        $region39: #{residual_mlp_pallas.1} parent=36 // pred_check_branch
          %675 = sbr.rel target = $region41
        $region40: #{residual_mlp_pallas.1} parent=36 // pred_region
          // Predicated region
          $region53: #{residual_mlp_pallas.1} parent=40 // pred_check
            _
          $region54: #{residual_mlp_pallas.1} parent=40 // pred_check_branch
            %704 = sbr.rel (0) target = $region56
          $region55: #{residual_mlp_pallas.1} parent=40 // pred_region
            loop: start=0, step=1, limit=1
            $region57: #{residual_mlp_pallas.1} parent=55 // loop_pre_header
              _
            $region58: #{residual_mlp_pallas.1} parent=55 // loop_header
              %s706 = sphi 0, %s710
              %p707 = scmp.ge.s32.totalorder %s706, 1
              %s711 = sphi [#allocation2], [#allocation2]
              %s712 = sphi %s7, %s7
            $region59: #{residual_mlp_pallas.1} parent=55 // loop_header_branch
              %709 = sbr.rel (%p707) target = $region63
            $region60: #{residual_mlp_pallas.1} parent=55 // loop_body
              _
            $region61: #{residual_mlp_pallas.1} parent=55 // loop_footer
              %s710 = sadd.s32 1, %s706
            $region62: #{residual_mlp_pallas.1} parent=55 // loop_footer_branch
              %705 = sbr.rel target = $region58
            $region63: #{residual_mlp_pallas.1} parent=55 // loop_exit
              _
            loop: start=0, step=1, limit=1
            $region64: #{residual_mlp_pallas.1} parent=55 // loop_pre_header
              _
            $region65: #{residual_mlp_pallas.1} parent=55 // loop_header
              %s715 = sphi 0, %s719
              %p716 = scmp.ge.s32.totalorder %s715, 1
              %s720 = sphi [#allocation2], [#allocation2]
              %s721 = sphi %s7, %s7
            $region66: #{residual_mlp_pallas.1} parent=55 // loop_header_branch
              %718 = sbr.rel (%p716) target = $region70
            $region67: #{residual_mlp_pallas.1} parent=55 // loop_body
              %v722 = vld [vmem:[%s720] sm:$0xf]
              %723 = vst [vmem:[%s721] sm:$0xf] %v722
              %v724 = vld [vmem:[%s720 + $0x4] sm:$0xf]
              %725 = vst [vmem:[%s721 + $0x4] sm:$0xf] %v724
              %v726 = vld [vmem:[%s720 + $0x8] sm:$0xf]
              %727 = vst [vmem:[%s721 + $0x8] sm:$0xf] %v726
              %v728 = vld [vmem:[%s720 + $0xc] sm:$0xf]
              %729 = vst [vmem:[%s721 + $0xc] sm:$0xf] %v728
              %v730 = vld [vmem:[%s720 + $0x10] sm:$0xf]
              %731 = vst [vmem:[%s721 + $0x10] sm:$0xf] %v730
              %v732 = vld [vmem:[%s720 + $0x14] sm:$0xf]
              %733 = vst [vmem:[%s721 + $0x14] sm:$0xf] %v732
              %v734 = vld [vmem:[%s720 + $0x18] sm:$0xf]
              %735 = vst [vmem:[%s721 + $0x18] sm:$0xf] %v734
              %v736 = vld [vmem:[%s720 + $0x1c] sm:$0xf]
              %737 = vst [vmem:[%s721 + $0x1c] sm:$0xf] %v736
            $region68: #{residual_mlp_pallas.1} parent=55 // loop_footer
              %s719 = sadd.s32 1, %s715
            $region69: #{residual_mlp_pallas.1} parent=55 // loop_footer_branch
              %714 = sbr.rel target = $region65
            $region70: #{residual_mlp_pallas.1} parent=55 // loop_exit
              _
          $region56: #{residual_mlp_pallas.1} parent=40 // pred_fallthru
            _
        $region41: #{residual_mlp_pallas.1} parent=36 // pred_fallthru
          _
        // Predicated region
        $region42: #{residual_mlp_pallas.1} parent=36 // pred_check
          _
        $region43: #{residual_mlp_pallas.1} parent=36 // pred_check_branch
          %677 = sbr.rel (0) target = $region45
        $region44: #{residual_mlp_pallas.1} parent=36 // pred_region
          loop: start=0, step=1, limit=1
          $region46: #{residual_mlp_pallas.1} parent=44 // loop_pre_header
            _
          $region47: #{residual_mlp_pallas.1} parent=44 // loop_header
            %s680 = sphi 0, %s684
            %p681 = scmp.ge.s32.totalorder %s680, 1
            %s685 = sphi [#allocation2], [#allocation2]
            %s686 = sphi %s7, %s7
          $region48: #{residual_mlp_pallas.1} parent=44 // loop_header_branch
            %683 = sbr.rel (%p681) target = $region52
          $region49: #{residual_mlp_pallas.1} parent=44 // loop_body
            %v687 = vld [vmem:[%s685] sm:$0xf]
            %688 = vst [vmem:[%s686] sm:$0xf] %v687
            %v689 = vld [vmem:[%s685 + $0x4] sm:$0xf]
            %690 = vst [vmem:[%s686 + $0x4] sm:$0xf] %v689
            %v691 = vld [vmem:[%s685 + $0x8] sm:$0xf]
            %692 = vst [vmem:[%s686 + $0x8] sm:$0xf] %v691
            %v693 = vld [vmem:[%s685 + $0xc] sm:$0xf]
            %694 = vst [vmem:[%s686 + $0xc] sm:$0xf] %v693
            %v695 = vld [vmem:[%s685 + $0x10] sm:$0xf]
            %696 = vst [vmem:[%s686 + $0x10] sm:$0xf] %v695
            %v697 = vld [vmem:[%s685 + $0x14] sm:$0xf]
            %698 = vst [vmem:[%s686 + $0x14] sm:$0xf] %v697
            %v699 = vld [vmem:[%s685 + $0x18] sm:$0xf]
            %700 = vst [vmem:[%s686 + $0x18] sm:$0xf] %v699
            %v701 = vld [vmem:[%s685 + $0x1c] sm:$0xf]
            %702 = vst [vmem:[%s686 + $0x1c] sm:$0xf] %v701
          $region50: #{residual_mlp_pallas.1} parent=44 // loop_footer
            %s684 = sadd.s32 1, %s680
          $region51: #{residual_mlp_pallas.1} parent=44 // loop_footer_branch
            %679 = sbr.rel target = $region47
          $region52: #{residual_mlp_pallas.1} parent=44 // loop_exit
            _
        $region45: #{residual_mlp_pallas.1} parent=36 // pred_fallthru
          _
      $region37: #{residual_mlp_pallas.1} parent=32 // pred_fallthru
        _
      %738 = vnop
    $region33: #{residual_mlp_pallas.1} parent=1 // pred_fallthru
      _
    // Predicated region
    $region71: #{residual_mlp_pallas.1} parent=1 // pred_check
      _
    $region72: #{residual_mlp_pallas.1} parent=1 // pred_check_branch
      %740 = sbr.rel (0) target = $region74
    $region73: #{residual_mlp_pallas.1} parent=1 // pred_region
      _
    $region74: #{residual_mlp_pallas.1} parent=1 // pred_fallthru
      _

</llo_original>
